<compile_context>
chip_gen: v7x
topology: tpu7x:2x2x1
jax: 0.10.0
libtpu: 0.0.40
codegen_flags: <defaults>
</compile_context>

<pallas_src>
import math
from functools import partial

import jax
import jax.numpy as jnp
import numpy as np
from jax.experimental import pallas as pl
from jax.experimental.pallas import tpu as pltpu


def _mha_fusion_kernel(head_dim,
                       x_ref, wqkv_ref, hmask_ref, wo_ref,
                       bq_ref, bk_ref, bv_ref, bo_ref, o_ref):
    x = x_ref[...]                                            # (BB, N, D)
    BB, N, D = x.shape

    # Residual path: mean over the N cls tokens.
    context = jnp.mean(x, axis=1)                             # (BB, D)

    # Fused QKV projection: one (BB*N, D) x (D, 3D) MXU matmul.
    qkv = jnp.dot(x.reshape(BB * N, D), wqkv_ref[...],
                  preferred_element_type=jnp.float32)         # (BB*N, 3D)
    qkv = qkv.reshape(BB, N, 3 * D)

    # mean over N commutes with the linear projection -> q == context @ Wq.T + bq
    q = jnp.mean(qkv[:, :, :D], axis=1) + bq_ref[...]         # (BB, D)
    k = qkv[:, :, D:2 * D] + bk_ref[...]                      # (BB, N, D)
    v = qkv[:, :, 2 * D:] + bv_ref[...]                       # (BB, N, D)

    # Fold the 1/sqrt(head_dim) scale into q once.
    qs = q * (1.0 / math.sqrt(head_dim))                      # (BB, D)

    # Per-head scores, replicated across each head's lanes:
    #   prod[b, n, d]  = qs[b, d] * k[b, n, d]
    #   s_exp[b, n, d] = sum_{d' in head(d)} prod[b, n, d']   (head-mask matmul)
    prod = qs[:, None, :] * k                                 # (BB, N, D)
    s_exp = jnp.dot(prod.reshape(BB * N, D), hmask_ref[...],
                    preferred_element_type=jnp.float32).reshape(BB, N, D)

    # Numerically-stable softmax over the N key tokens, all heads at once.
    s_max = jnp.max(s_exp, axis=1, keepdims=True)             # (BB, 1, D)
    p = jnp.exp(s_exp - s_max)                                # (BB, N, D)
    denom = jnp.sum(p, axis=1, keepdims=True)                 # (BB, 1, D)
    p = p * pl.reciprocal(denom, approx=True)

    # Attention output (weights already replicated across each head's lanes).
    attn = jnp.sum(p * v, axis=1)                             # (BB, D)

    # Output projection + bias + residual in one epilogue matmul.
    out = jnp.dot(attn, wo_ref[...], preferred_element_type=jnp.float32)
    out = out + bo_ref[...] + context                         # (BB, D)
    o_ref[...] = out.astype(o_ref.dtype)


def multihead_attention_fusion(cls_tokens, params, nheads, block_b=None):
    B, N, D = cls_tokens.shape
    assert D % nheads == 0
    head_dim = D // nheads
    wq, wk, wv, wo, bq, bk, bv, bo = params

    # Host-side prep: fuse + pre-transpose projection weights so the kernel always
    # contracts against RHS dim 0 (no in-kernel transposes), and build the
    # block-diagonal head mask used for the per-head score reduce+broadcast.
    w_qkv = jnp.concatenate([wq.T, wk.T, wv.T], axis=1)       # (D, 3D)
    wo_t = wo.T                                               # (D, D)
    head_ids = jnp.arange(D, dtype=jnp.int32) // head_dim
    hmask = (head_ids[:, None] == head_ids[None, :]).astype(cls_tokens.dtype)  # (D, D)

    # Batch blocking: BB rows per grid step (multiple of 8 -> full sublanes and
    # sublane-dense output stores).  Pad the batch to a multiple of BB.
    if block_b is None:
        block_b = min(64, ((B + 7) // 8) * 8)
    Bp = ((B + block_b - 1) // block_b) * block_b
    x = cls_tokens
    if Bp != B:
        x = jnp.concatenate(
            [x, jnp.zeros((Bp - B, N, D), dtype=cls_tokens.dtype)], axis=0)

    kernel = partial(_mha_fusion_kernel, head_dim)

    def const2d(shape):
        # Grid-invariant weight/bias blocks (same tile every step).
        # TODO(synk): on v7x with large D, single-buffer these (pipeline_mode=pl.Buffered(1))
        # to halve resident weight VMEM under the 64 MiB limit.
        return pl.BlockSpec(shape, lambda b: (0, 0))

    out = pl.pallas_call(
        kernel,
        out_shape=jax.ShapeDtypeStruct((Bp, D), cls_tokens.dtype),
        grid=(Bp // block_b,),
        in_specs=[
            pl.BlockSpec((block_b, N, D), lambda b: (b, 0, 0)),   # cls tokens
            const2d((D, 3 * D)),                                  # fused [Wq|Wk|Wv]^T
            const2d((D, D)),                                      # head mask
            const2d((D, D)),                                      # Wo^T
            const2d((1, D)), const2d((1, D)),                     # bq, bk
            const2d((1, D)), const2d((1, D)),                     # bv, bo
        ],
        out_specs=pl.BlockSpec((block_b, D), lambda b: (b, 0)),
        compiler_params=pltpu.CompilerParams(
            dimension_semantics=("parallel",),
            vmem_limit_bytes=32 * 1024 * 1024,
        ),
    )(x, w_qkv, hmask, wo_t, bq, bk, bv, bo)
    return out[:B]


def reference(cls_tokens, params, nheads):
    """Pure-JAX mirror of the PyTorch forward (for correctness checking)."""
    wq, wk, wv, wo, bq, bk, bv, bo = params
    B, N, D = cls_tokens.shape
    hd = D // nheads
    context = jnp.mean(cls_tokens, axis=1)                    # (B, D)
    q = context @ wq.T + bq[0]
    k = jnp.einsum('bnd,ed->bne', cls_tokens, wk) + bk[0]
    v = jnp.einsum('bnd,ed->bne', cls_tokens, wv) + bv[0]
    qh = q.reshape(B, nheads, hd)
    kh = k.reshape(B, N, nheads, hd)
    vh = v.reshape(B, N, nheads, hd)
    s = jnp.einsum('bhd,bnhd->bhn', qh, kh) / math.sqrt(hd)
    p = jax.nn.softmax(s, axis=-1)
    o = jnp.einsum('bhn,bnhd->bhd', p, vh).reshape(B, D)
    return o @ wo.T + bo[0] + context


if __name__ == "__main__":
    B, N, D, NHEADS = 2, 8, 32, 4

    key = jax.random.PRNGKey(0)
    kx, kin, kout = jax.random.split(key, 3)

    # nn.MultiheadAttention parameters: in_proj_weight (3D, D) split into Wq/Wk/Wv,
    # in_proj_bias (3D,), out_proj weight (D, D) + bias (D,). Deterministic init.
    in_proj_w = 0.1 * jax.random.normal(kin, (3 * D, D), dtype=jnp.float32)
    wq, wk, wv = in_proj_w[:D], in_proj_w[D:2 * D], in_proj_w[2 * D:]
    wo = 0.1 * jax.random.normal(kout, (D, D), dtype=jnp.float32)
    bq = jnp.full((1, D), 0.01, dtype=jnp.float32)
    bk = jnp.full((1, D), -0.02, dtype=jnp.float32)
    bv = jnp.full((1, D), 0.03, dtype=jnp.float32)
    bo = jnp.full((1, D), 0.005, dtype=jnp.float32)
    params = (wq, wk, wv, wo, bq, bk, bv, bo)

    cls_tokens = jax.random.normal(kx, (B, N, D), dtype=jnp.float32)

    out = multihead_attention_fusion(cls_tokens, params, NHEADS)
    out = jax.block_until_ready(out)

    ref = jax.block_until_ready(reference(cls_tokens, params, NHEADS))
    np.testing.assert_allclose(np.asarray(out), np.asarray(ref), rtol=1e-2, atol=1e-2)

    print("KERNEL_OK")
</pallas_src>

<mosaic_0001>
module attributes {stable_mosaic.version = 11 : i64} {
  func.func @_mha_fusion_kernel(%arg0: i32, %arg1: memref<8x8x32xf32, #tpu.memory_space<vmem>>, %arg2: memref<32x96xf32, #tpu.memory_space<vmem>>, %arg3: memref<32x32xf32, #tpu.memory_space<vmem>>, %arg4: memref<32x32xf32, #tpu.memory_space<vmem>>, %arg5: memref<1x32xf32, #tpu.memory_space<vmem>>, %arg6: memref<1x32xf32, #tpu.memory_space<vmem>>, %arg7: memref<1x32xf32, #tpu.memory_space<vmem>>, %arg8: memref<1x32xf32, #tpu.memory_space<vmem>>, %arg9: memref<8x32xf32, #tpu.memory_space<vmem>>) attributes {dimension_semantics = [#tpu.dimension_semantics<parallel>], iteration_bounds = array<i64: 1>, scalar_prefetch = 0 : i64, scratch_operands = 0 : i64, tpu.core_type = #tpu.core_type<tc>, window_params = [{transform_indices = @transform_0, window_bounds = array<i64: 8, 8, 32>}, {pipeline_mode = #tpu.pipeline_mode<synchronous>, transform_indices = @transform_1, window_bounds = array<i64: 32, 96>}, {pipeline_mode = #tpu.pipeline_mode<synchronous>, transform_indices = @transform_2, window_bounds = array<i64: 32, 32>}, {pipeline_mode = #tpu.pipeline_mode<synchronous>, transform_indices = @transform_3, window_bounds = array<i64: 32, 32>}, {pipeline_mode = #tpu.pipeline_mode<synchronous>, transform_indices = @transform_4, window_bounds = array<i64: 1, 32>}, {pipeline_mode = #tpu.pipeline_mode<synchronous>, transform_indices = @transform_5, window_bounds = array<i64: 1, 32>}, {pipeline_mode = #tpu.pipeline_mode<synchronous>, transform_indices = @transform_6, window_bounds = array<i64: 1, 32>}, {pipeline_mode = #tpu.pipeline_mode<synchronous>, transform_indices = @transform_7, window_bounds = array<i64: 1, 32>}, {transform_indices = @transform_8, window_bounds = array<i64: 8, 32>}]} {
    %c0 = arith.constant 0 : index
    %c0_0 = arith.constant 0 : index
    %c0_1 = arith.constant 0 : index
    %0 = vector.load %arg1[%c0, %c0_0, %c0_1] : memref<8x8x32xf32, #tpu.memory_space<vmem>>, vector<8x8x32xf32>
    %cst = arith.constant dense<0.000000e+00> : vector<8x32xf32>
    %1 = vector.multi_reduction <add>, %0, %cst [1] : vector<8x8x32xf32> to vector<8x32xf32>
    %cst_2 = arith.constant 8.000000e+00 : f32
    %2 = vector.broadcast %cst_2 : f32 to vector<8x32xf32>
    %3 = arith.divf %1, %2 : vector<8x32xf32>
    %4 = vector.shape_cast %0 : vector<8x8x32xf32> to vector<64x32xf32>
    %c0_3 = arith.constant 0 : index
    %c0_4 = arith.constant 0 : index
    %5 = vector.load %arg2[%c0_3, %c0_4] : memref<32x96xf32, #tpu.memory_space<vmem>>, vector<32x96xf32>
    %cst_5 = arith.constant dense<0.000000e+00> : vector<64x96xf32>
    %6 = tpu.matmul %4, %5, %cst_5 {dimension_numbers = #tpu.dot_dimension_numbers<[1], [0], [0], [1], [0, 0, 1, 1], [], []>} : vector<64x32xf32>, vector<32x96xf32>, vector<64x96xf32> -> vector<64x96xf32>
    %7 = vector.shape_cast %6 : vector<64x96xf32> to vector<8x8x96xf32>
    %8 = vector.extract_strided_slice %7 {offsets = [0, 0, 0], sizes = [8, 8, 32], strides = [1, 1, 1]} : vector<8x8x96xf32> to vector<8x8x32xf32>
    %cst_6 = arith.constant dense<0.000000e+00> : vector<8x32xf32>
    %9 = vector.multi_reduction <add>, %8, %cst_6 [1] : vector<8x8x32xf32> to vector<8x32xf32>
    %cst_7 = arith.constant 8.000000e+00 : f32
    %10 = vector.broadcast %cst_7 : f32 to vector<8x32xf32>
    %11 = arith.divf %9, %10 : vector<8x32xf32>
    %c0_8 = arith.constant 0 : index
    %c0_9 = arith.constant 0 : index
    %12 = vector.load %arg5[%c0_8, %c0_9] : memref<1x32xf32, #tpu.memory_space<vmem>>, vector<1x32xf32>
    %13 = vector.broadcast %12 : vector<1x32xf32> to vector<8x32xf32>
    %14 = arith.addf %11, %13 : vector<8x32xf32>
    %15 = vector.extract_strided_slice %7 {offsets = [0, 0, 32], sizes = [8, 8, 32], strides = [1, 1, 1]} : vector<8x8x96xf32> to vector<8x8x32xf32>
    %c0_10 = arith.constant 0 : index
    %c0_11 = arith.constant 0 : index
    %16 = vector.load %arg6[%c0_10, %c0_11] : memref<1x32xf32, #tpu.memory_space<vmem>>, vector<1x32xf32>
    %17 = vector.shape_cast %16 : vector<1x32xf32> to vector<1x1x32xf32>
    %18 = vector.broadcast %17 : vector<1x1x32xf32> to vector<8x8x32xf32>
    %19 = arith.addf %15, %18 : vector<8x8x32xf32>
    %20 = vector.extract_strided_slice %7 {offsets = [0, 0, 64], sizes = [8, 8, 32], strides = [1, 1, 1]} : vector<8x8x96xf32> to vector<8x8x32xf32>
    %c0_12 = arith.constant 0 : index
    %c0_13 = arith.constant 0 : index
    %21 = vector.load %arg7[%c0_12, %c0_13] : memref<1x32xf32, #tpu.memory_space<vmem>>, vector<1x32xf32>
    %22 = vector.shape_cast %21 : vector<1x32xf32> to vector<1x1x32xf32>
    %23 = vector.broadcast %22 : vector<1x1x32xf32> to vector<8x8x32xf32>
    %24 = arith.addf %20, %23 : vector<8x8x32xf32>
    %cst_14 = arith.constant 0.353553385 : f32
    %25 = vector.broadcast %cst_14 : f32 to vector<8x32xf32>
    %26 = arith.mulf %14, %25 : vector<8x32xf32>
    %27 = vector.shape_cast %26 : vector<8x32xf32> to vector<8x1x32xf32>
    %28 = vector.broadcast %27 : vector<8x1x32xf32> to vector<8x8x32xf32>
    %29 = arith.mulf %28, %19 : vector<8x8x32xf32>
    %30 = vector.shape_cast %29 : vector<8x8x32xf32> to vector<64x32xf32>
    %c0_15 = arith.constant 0 : index
    %c0_16 = arith.constant 0 : index
    %31 = vector.load %arg3[%c0_15, %c0_16] : memref<32x32xf32, #tpu.memory_space<vmem>>, vector<32x32xf32>
    %cst_17 = arith.constant dense<0.000000e+00> : vector<64x32xf32>
    %32 = tpu.matmul %30, %31, %cst_17 {dimension_numbers = #tpu.dot_dimension_numbers<[1], [0], [0], [1], [0, 0, 1, 1], [], []>} : vector<64x32xf32>, vector<32x32xf32>, vector<64x32xf32> -> vector<64x32xf32>
    %33 = vector.shape_cast %32 : vector<64x32xf32> to vector<8x8x32xf32>
    %cst_18 = arith.constant dense<0xFF800000> : vector<8x32xf32>
    %34 = vector.multi_reduction <maximumf>, %33, %cst_18 [1] : vector<8x8x32xf32> to vector<8x32xf32>
    %35 = vector.shape_cast %34 : vector<8x32xf32> to vector<8x1x32xf32>
    %36 = vector.broadcast %35 : vector<8x1x32xf32> to vector<8x8x32xf32>
    %37 = arith.subf %33, %36 : vector<8x8x32xf32>
    %38 = math.exp %37 : vector<8x8x32xf32>
    %cst_19 = arith.constant dense<0.000000e+00> : vector<8x32xf32>
    %39 = vector.multi_reduction <add>, %38, %cst_19 [1] : vector<8x8x32xf32> to vector<8x32xf32>
    %40 = vector.shape_cast %39 : vector<8x32xf32> to vector<8x1x32xf32>
    %41 = tpu.reciprocal %40 {approx = true} : vector<8x1x32xf32> -> vector<8x1x32xf32>
    %42 = vector.broadcast %41 : vector<8x1x32xf32> to vector<8x8x32xf32>
    %43 = arith.mulf %38, %42 : vector<8x8x32xf32>
    %44 = arith.mulf %43, %24 : vector<8x8x32xf32>
    %cst_20 = arith.constant dense<0.000000e+00> : vector<8x32xf32>
    %45 = vector.multi_reduction <add>, %44, %cst_20 [1] : vector<8x8x32xf32> to vector<8x32xf32>
    %c0_21 = arith.constant 0 : index
    %c0_22 = arith.constant 0 : index
    %46 = vector.load %arg4[%c0_21, %c0_22] : memref<32x32xf32, #tpu.memory_space<vmem>>, vector<32x32xf32>
    %cst_23 = arith.constant dense<0.000000e+00> : vector<8x32xf32>
    %47 = tpu.matmul %45, %46, %cst_23 {dimension_numbers = #tpu.dot_dimension_numbers<[1], [0], [0], [1], [0, 0, 1, 1], [], []>} : vector<8x32xf32>, vector<32x32xf32>, vector<8x32xf32> -> vector<8x32xf32>
    %c0_24 = arith.constant 0 : index
    %c0_25 = arith.constant 0 : index
    %48 = vector.load %arg8[%c0_24, %c0_25] : memref<1x32xf32, #tpu.memory_space<vmem>>, vector<1x32xf32>
    %49 = vector.broadcast %48 : vector<1x32xf32> to vector<8x32xf32>
    %50 = arith.addf %47, %49 : vector<8x32xf32>
    %51 = arith.addf %50, %3 : vector<8x32xf32>
    %c0_26 = arith.constant 0 : index
    %c0_27 = arith.constant 0 : index
    %52 = vector.load %arg9[%c0_26, %c0_27] : memref<8x32xf32, #tpu.memory_space<vmem>>, vector<8x32xf32>
    tpu.vector_store %arg9[%c0_26, %c0_27], %51 {strides = array<i32>} : memref<8x32xf32, #tpu.memory_space<vmem>>, vector<8x32xf32>,
    return
  }
  func.func @transform_0(%arg0: i32) -> (i32, i32, i32) {
    %c0_i32 = arith.constant 0 : i32
    %c0_i32_0 = arith.constant 0 : i32
    %c0_i32_1 = arith.constant 0 : i32
    return %arg0, %c0_i32, %c0_i32_0 : i32, i32, i32
  }
  func.func @transform_1(%arg0: i32) -> (i32, i32) {
    %c0_i32 = arith.constant 0 : i32
    %c0_i32_0 = arith.constant 0 : i32
    %c0_i32_1 = arith.constant 0 : i32
    return %c0_i32, %c0_i32_0 : i32, i32
  }
  func.func @transform_2(%arg0: i32) -> (i32, i32) {
    %c0_i32 = arith.constant 0 : i32
    %c0_i32_0 = arith.constant 0 : i32
    %c0_i32_1 = arith.constant 0 : i32
    return %c0_i32, %c0_i32_0 : i32, i32
  }
  func.func @transform_3(%arg0: i32) -> (i32, i32) {
    %c0_i32 = arith.constant 0 : i32
    %c0_i32_0 = arith.constant 0 : i32
    %c0_i32_1 = arith.constant 0 : i32
    return %c0_i32, %c0_i32_0 : i32, i32
  }
  func.func @transform_4(%arg0: i32) -> (i32, i32) {
    %c0_i32 = arith.constant 0 : i32
    %c0_i32_0 = arith.constant 0 : i32
    %c0_i32_1 = arith.constant 0 : i32
    return %c0_i32, %c0_i32_0 : i32, i32
  }
  func.func @transform_5(%arg0: i32) -> (i32, i32) {
    %c0_i32 = arith.constant 0 : i32
    %c0_i32_0 = arith.constant 0 : i32
    %c0_i32_1 = arith.constant 0 : i32
    return %c0_i32, %c0_i32_0 : i32, i32
  }
  func.func @transform_6(%arg0: i32) -> (i32, i32) {
    %c0_i32 = arith.constant 0 : i32
    %c0_i32_0 = arith.constant 0 : i32
    %c0_i32_1 = arith.constant 0 : i32
    return %c0_i32, %c0_i32_0 : i32, i32
  }
  func.func @transform_7(%arg0: i32) -> (i32, i32) {
    %c0_i32 = arith.constant 0 : i32
    %c0_i32_0 = arith.constant 0 : i32
    %c0_i32_1 = arith.constant 0 : i32
    return %c0_i32, %c0_i32_0 : i32, i32
  }
  func.func @transform_8(%arg0: i32) -> (i32, i32) {
    %c0_i32 = arith.constant 0 : i32
    %c0_i32_0 = arith.constant 0 : i32
    return %arg0, %c0_i32 : i32, i32
  }
}

</mosaic_0001>

<llo_original>
// kernel: tpu_custom_call.1
$region0: #{tpu_custom_call.1}
  #allocation0 [shape = 'u32[]', space=smem, size = 0x4, offset = 0x4, fixed_abs, tag = 'smem constant byte address 0x4 - core index']
  #allocation1 [shape = 'u32[144,128]{1,0:T(1,128)}', space=vmem, size = 0x12000, scoped, tag = 'internal scratch']
  %s0 = inlined_call_operand.hbm [shape: f32[8,8,32], index: 0, kind: input, shape index: {}]
  %s1 = inlined_call_operand.hbm [shape: f32[32,96], index: 1, kind: input, shape index: {}]
  %s2 = inlined_call_operand.hbm [shape: f32[32,32], index: 2, kind: input, shape index: {}]
  %s3 = inlined_call_operand.hbm [shape: f32[32,32], index: 3, kind: input, shape index: {}]
  %s4 = inlined_call_operand.vmem [shape: f32[1,32], index: 4, kind: input, shape index: {}]
  %s5 = inlined_call_operand.vmem [shape: f32[1,32], index: 5, kind: input, shape index: {}]
  %s6 = inlined_call_operand.vmem [shape: f32[1,32], index: 6, kind: input, shape index: {}]
  %s7 = inlined_call_operand.vmem [shape: f32[1,32], index: 7, kind: input, shape index: {}]
  %s8 = inlined_call_operand.hbm [shape: f32[8,32], index: 8, kind: output, shape index: {}]
  %s9 = sld [smem:[#allocation0]]
  $region58: #{tpu_custom_call.1} parent=0
    _
  %s11 = ssub.s32 1, %s9
  %s12 = scalar_select 0, %s11, %s9
  $region1: #{tpu_custom_call.1} parent=0
    #allocation2 [shape = 'u8[32768]{0}', space=vmem, size = 0x8000, scoped, tag = 'input window, operand 0, single buffered']
    #allocation3 [shape = 's32[1]{0}', space=sflag, size = 0x4, scoped, tag = 'scoped memory for tpu_custom_call.1']
    #allocation4 [shape = 's32[1]{0}', space=sflag, size = 0x4, scoped, tag = 'scoped memory for tpu_custom_call.1']
    #allocation5 [shape = 'u8[16384]{0}', space=vmem, size = 0x4000, scoped, tag = 'input window, operand 1, single buffered']
    #allocation6 [shape = 's32[1]{0}', space=sflag, size = 0x4, scoped, tag = 'scoped memory for tpu_custom_call.1']
    #allocation7 [shape = 'u8[16384]{0}', space=vmem, size = 0x4000, scoped, tag = 'input window, operand 2, single buffered']
    #allocation8 [shape = 'u8[16384]{0}', space=vmem, size = 0x4000, scoped, tag = 'input window, operand 3, single buffered']
    #allocation9 [shape = 's32[1]{0}', space=sflag, size = 0x4, scoped, tag = 'scoped memory for tpu_custom_call.1']
    #allocation10 [shape = 'u8[4096]{0}', space=vmem, size = 0x1000, scoped, tag = 'output window, operand 0, single buffered']
    %13 = vsyncpa [#allocation3], 0
    %14 = vsyncpa [#allocation6], 0
    %15 = vsyncpa [#allocation9], 0
    %16 = vsyncpa [#allocation4], 0
    // Predicated region
    $region2: #{tpu_custom_call.1} parent=1 // pred_check
      _
    $region3: #{tpu_custom_call.1} parent=1 // pred_check_branch
      %18 = sbr.rel (0) target = $region5
    $region4: #{tpu_custom_call.1} parent=1 // pred_region
      %s20 = ssub.s32 1024, 1024
      %21 = vsyncadd [#allocation3], %s20
      %s22 = sshll.u32 [#allocation2], 4
      %s23 = int_to_ptr.vmem [resolvable:$true] %s22
      %28 = dma.hbm_to_vmem [thread:$0]  %s0, 1024, %s23, [#allocation3], 128, 128, 8
    $region5: #{tpu_custom_call.1} parent=1 // pred_fallthru
      _
    // Predicated region
    $region6: #{tpu_custom_call.1} parent=1 // pred_check
      _
    $region7: #{tpu_custom_call.1} parent=1 // pred_check_branch
      %30 = sbr.rel (0) target = $region9
    $region8: #{tpu_custom_call.1} parent=1 // pred_region
      %s32 = ssub.s32 512, 512
      %33 = vsyncadd [#allocation6], %s32
      %s34 = sshll.u32 [#allocation5], 4
      %s35 = int_to_ptr.vmem [resolvable:$true] %s34
      %40 = dma.hbm_to_vmem [thread:$0]  %s1, 512, %s35, [#allocation6], 128, 128, 8
    $region9: #{tpu_custom_call.1} parent=1 // pred_fallthru
      _
    // Predicated region
    $region10: #{tpu_custom_call.1} parent=1 // pred_check
      _
    $region11: #{tpu_custom_call.1} parent=1 // pred_check_branch
      %42 = sbr.rel (0) target = $region13
    $region12: #{tpu_custom_call.1} parent=1 // pred_region
      %s44 = ssub.s32 512, 512
      %45 = vsyncadd [#allocation6], %s44
      %s46 = sshll.u32 [#allocation7], 4
      %s47 = int_to_ptr.vmem [resolvable:$true] %s46
      %52 = dma.hbm_to_vmem [thread:$0]  %s2, 512, %s47, [#allocation6], 128, 128, 8
    $region13: #{tpu_custom_call.1} parent=1 // pred_fallthru
      _
    // Predicated region
    $region14: #{tpu_custom_call.1} parent=1 // pred_check
      _
    $region15: #{tpu_custom_call.1} parent=1 // pred_check_branch
      %54 = sbr.rel (0) target = $region17
    $region16: #{tpu_custom_call.1} parent=1 // pred_region
      %s56 = ssub.s32 512, 512
      %57 = vsyncadd [#allocation9], %s56
      %s58 = sshll.u32 [#allocation8], 4
      %s59 = int_to_ptr.vmem [resolvable:$true] %s58
      %64 = dma.hbm_to_vmem [thread:$0]  %s3, 512, %s59, [#allocation9], 128, 128, 8
    $region17: #{tpu_custom_call.1} parent=1 // pred_fallthru
      _
    // Predicated region
    $region18: #{tpu_custom_call.1} parent=1 // pred_check
      _
    $region19: #{tpu_custom_call.1} parent=1 // pred_check_branch
      %66 = sbr.rel (0) target = $region21
    $region20: #{tpu_custom_call.1} parent=1 // pred_region
      _
    $region21: #{tpu_custom_call.1} parent=1 // pred_fallthru
      _
    // Predicated region
    $region22: #{tpu_custom_call.1} parent=1 // pred_check
      _
    $region23: #{tpu_custom_call.1} parent=1 // pred_check_branch
      %68 = sbr.rel (0) target = $region25
    $region24: #{tpu_custom_call.1} parent=1 // pred_region
      _
    $region25: #{tpu_custom_call.1} parent=1 // pred_fallthru
      _
    // Predicated region
    $region26: #{tpu_custom_call.1} parent=1 // pred_check
      _
    $region27: #{tpu_custom_call.1} parent=1 // pred_check_branch
      %70 = sbr.rel (0) target = $region29
    $region28: #{tpu_custom_call.1} parent=1 // pred_region
      _
    $region29: #{tpu_custom_call.1} parent=1 // pred_fallthru
      _
    // Predicated region
    $region30: #{tpu_custom_call.1} parent=1 // pred_check
      _
    $region31: #{tpu_custom_call.1} parent=1 // pred_check_branch
      %72 = sbr.rel (0) target = $region33
    $region32: #{tpu_custom_call.1} parent=1 // pred_region
      _
    $region33: #{tpu_custom_call.1} parent=1 // pred_fallthru
      _
    // Predicated region
    $region34: #{tpu_custom_call.1} parent=1 // pred_check
      _
    $region35: #{tpu_custom_call.1} parent=1 // pred_check_branch
      %74 = sbr.rel (0) target = $region37
    $region36: #{tpu_custom_call.1} parent=1 // pred_region
      %75 = dma.done [#allocation3], 1024
    $region37: #{tpu_custom_call.1} parent=1 // pred_fallthru
      _
    // Predicated region
    $region38: #{tpu_custom_call.1} parent=1 // pred_check
      _
    $region39: #{tpu_custom_call.1} parent=1 // pred_check_branch
      %77 = sbr.rel (0) target = $region41
    $region40: #{tpu_custom_call.1} parent=1 // pred_region
      %78 = dma.done [#allocation6], 512
    $region41: #{tpu_custom_call.1} parent=1 // pred_fallthru
      _
    // Predicated region
    $region42: #{tpu_custom_call.1} parent=1 // pred_check
      _
    $region43: #{tpu_custom_call.1} parent=1 // pred_check_branch
      %80 = sbr.rel (0) target = $region45
    $region44: #{tpu_custom_call.1} parent=1 // pred_region
      %81 = dma.done [#allocation6], 512
    $region45: #{tpu_custom_call.1} parent=1 // pred_fallthru
      _
    // Predicated region
    $region46: #{tpu_custom_call.1} parent=1 // pred_check
      _
    $region47: #{tpu_custom_call.1} parent=1 // pred_check_branch
      %83 = sbr.rel (0) target = $region49
    $region48: #{tpu_custom_call.1} parent=1 // pred_region
      %84 = dma.done [#allocation9], 512
    $region49: #{tpu_custom_call.1} parent=1 // pred_fallthru
      _
    %v85 = vld [vmem:[#allocation2] sm:$0xff]
    %v86 = vld [vmem:[#allocation2 + $0x8] sm:$0xff]
    %v87 = vld [vmem:[#allocation2 + $0x10] sm:$0xff]
    %v88 = vld [vmem:[#allocation2 + $0x18] sm:$0xff]
    %v89 = vld [vmem:[#allocation2 + $0x20] sm:$0xff]
    %v90 = vld [vmem:[#allocation2 + $0x28] sm:$0xff]
    %v91 = vld [vmem:[#allocation2 + $0x30] sm:$0xff]
    %v92 = vld [vmem:[#allocation2 + $0x38] sm:$0xff]
    %vm93 = vcmask 261120
    %v94 = vsel %vm93, %v85, 0.0
    %v95 = vrot.slane %v94, 4
    %v96 = vadd.f32 %v94, %v95
    %v97 = vrot.slane %v96, 2
    %v98 = vadd.f32 %v96, %v97
    %v99 = vrot.slane %v98, 1
    %v100 = vadd.f32 %v98, %v99
    %v101 = vsel %vm93, %v86, 0.0
    %v102 = vrot.slane %v101, 4
    %v103 = vadd.f32 %v101, %v102
    %v104 = vrot.slane %v103, 2
    %v105 = vadd.f32 %v103, %v104
    %v106 = vrot.slane %v105, 1
    %v107 = vadd.f32 %v105, %v106
    %v108 = vsel %vm93, %v87, 0.0
    %v109 = vrot.slane %v108, 4
    %v110 = vadd.f32 %v108, %v109
    %v111 = vrot.slane %v110, 2
    %v112 = vadd.f32 %v110, %v111
    %v113 = vrot.slane %v112, 1
    %v114 = vadd.f32 %v112, %v113
    %v115 = vsel %vm93, %v88, 0.0
    %v116 = vrot.slane %v115, 4
    %v117 = vadd.f32 %v115, %v116
    %v118 = vrot.slane %v117, 2
    %v119 = vadd.f32 %v117, %v118
    %v120 = vrot.slane %v119, 1
    %v121 = vadd.f32 %v119, %v120
    %v122 = vsel %vm93, %v89, 0.0
    %v123 = vrot.slane %v122, 4
    %v124 = vadd.f32 %v122, %v123
    %v125 = vrot.slane %v124, 2
    %v126 = vadd.f32 %v124, %v125
    %v127 = vrot.slane %v126, 1
    %v128 = vadd.f32 %v126, %v127
    %v129 = vsel %vm93, %v90, 0.0
    %v130 = vrot.slane %v129, 4
    %v131 = vadd.f32 %v129, %v130
    %v132 = vrot.slane %v131, 2
    %v133 = vadd.f32 %v131, %v132
    %v134 = vrot.slane %v133, 1
    %v135 = vadd.f32 %v133, %v134
    %v136 = vsel %vm93, %v91, 0.0
    %v137 = vrot.slane %v136, 4
    %v138 = vadd.f32 %v136, %v137
    %v139 = vrot.slane %v138, 2
    %v140 = vadd.f32 %v138, %v139
    %v141 = vrot.slane %v140, 1
    %v142 = vadd.f32 %v140, %v141
    %v143 = vsel %vm93, %v92, 0.0
    %v144 = vrot.slane %v143, 4
    %v145 = vadd.f32 %v143, %v144
    %v146 = vrot.slane %v145, 2
    %v147 = vadd.f32 %v145, %v146
    %v148 = vrot.slane %v147, 1
    %v149 = vadd.f32 %v147, %v148
    %v150 = vrcp.pop 8.0
    %v151 = vmul.f32 %v100, %v150
    %v152 = vmul.f32 %v107, %v150
    %v153 = vmul.f32 %v114, %v150
    %v154 = vmul.f32 %v121, %v150
    %v155 = vmul.f32 %v128, %v150
    %v156 = vmul.f32 %v135, %v150
    %v157 = vmul.f32 %v142, %v150
    %v158 = vmul.f32 %v149, %v150
    %v159 = vld [vmem:[#allocation5] sm:$0xff]
    %v160 = vld [vmem:[#allocation5 + $0x8] sm:$0xff]
    %v161 = vld [vmem:[#allocation5 + $0x10] sm:$0xff]
    %v162 = vld [vmem:[#allocation5 + $0x18] sm:$0xff]
    %v164 = vsel %vm93, %v85, 0
    %v167 = vsel %vm93, %v86, 0
    %v170 = vsel %vm93, %v87, 0
    %v173 = vsel %vm93, %v88, 0
    %v176 = vsel %vm93, %v89, 0
    %v179 = vsel %vm93, %v90, 0
    %v182 = vsel %vm93, %v91, 0
    %v185 = vsel %vm93, %v92, 0
    %187 = vmatprep.subr.mxu0 0.0
    %188 = vmatpush1.msra.mxu0 %v159
    %189 = vmatprep.subr.mxu0 0.0
    %190 = vmatpush1.msra.mxu0 %v160
    %191 = vmatprep.subr.mxu0 0.0
    %192 = vmatpush1.msra.mxu0 %v161
    %193 = vmatprep.subr.mxu0 0.0
    %194 = vmatpush1.msra.mxu0 %v162
    %195 = vmatprep.subr.mxu0 0.0
    %196 = vmatpush1.msra.mxu0 0.0
    %197 = vmatprep.subr.mxu0 0.0
    %198 = vmatpush1.msra.mxu0 0.0
    %199 = vmatprep.subr.mxu0 0.0
    %200 = vmatpush1.msra.mxu0 0.0
    %201 = vmatprep.subr.mxu0 0.0
    %202 = vmatpush1.msra.mxu0 0.0
    %203 = vmatprep.subr.mxu0 0.0
    %204 = vmatpush1.msra.mxu0 0.0
    %205 = vmatprep.subr.mxu0 0.0
    %206 = vmatpush1.msra.mxu0 0.0
    %207 = vmatprep.subr.mxu0 0.0
    %208 = vmatpush1.msra.mxu0 0.0
    %209 = vmatprep.subr.mxu0 0.0
    %210 = vmatpush1.msra.mxu0 0.0
    %211 = vmatprep.subr.mxu0 0.0
    %212 = vmatpush1.msra.mxu0 0.0
    %213 = vmatprep.subr.mxu0 0.0
    %214 = vmatpush1.msra.mxu0 0.0
    %215 = vmatprep.subr.mxu0 0.0
    %216 = vmatpush1.msra.mxu0 0.0
    %217 = vmatprep.subr.mxu0 0.0
    %218 = vmatpush1.msra.mxu0 0.0
    %219 = vmatprep.subr.mxu0 0.0
    %220 = vmatpush1.msra.mxu0 0.0
    %221 = vmatprep.subr.mxu0 0.0
    %222 = vmatpush1.msra.mxu0 0.0
    %223 = vmatprep.subr.mxu0 0.0
    %224 = vmatpush1.msra.mxu0 0.0
    %225 = vmatprep.subr.mxu0 0.0
    %226 = vmatpush1.msra.mxu0 0.0
    %227 = vmatprep.subr.mxu0 0.0
    %228 = vmatpush1.msra.mxu0 0.0
    %229 = vmatprep.subr.mxu0 0.0
    %230 = vmatpush1.msra.mxu0 0.0
    %231 = vmatprep.subr.mxu0 0.0
    %232 = vmatpush1.msra.mxu0 0.0
    %233 = vmatprep.subr.mxu0 0.0
    %234 = vmatpush1.msra.mxu0 0.0
    %235 = vmatprep.subr.mxu0 0.0
    %236 = vmatpush1.msra.mxu0 0.0
    %237 = vmatprep.subr.mxu0 0.0
    %238 = vmatpush1.msra.mxu0 0.0
    %239 = vmatprep.subr.mxu0 0.0
    %240 = vmatpush1.msra.mxu0 0.0
    %241 = vmatprep.subr.mxu0 0.0
    %242 = vmatpush1.msra.mxu0 0.0
    %243 = vmatprep.subr.mxu0 0.0
    %244 = vmatpush1.msra.mxu0 0.0
    %245 = vmatprep.subr.mxu0 0.0
    %246 = vmatpush1.msra.mxu0 0.0
    %247 = vmatprep.subr.mxu0 0.0
    %248 = vmatpush1.msra.mxu0 0.0
    %249 = vmatprep.subr.mxu0 0.0
    %250 = vmatpush1.msra.mxu0 0.0
    %251 = vmatprep.mubr.f32.mxu0 0.0
    %252 = vmatmul.mubr.f32.gmra.mrb[0].mxu0 %v164
    %v253 = vpop.f32.mrb[0].mxu0
    %v254 = vadd.f32 0.0, %v253
    %v255 = vpop.f32.mrb[0].mxu0
    %256 = vmatprep.mubr.f32.mxu0 0.0
    %257 = vmatmul.mubr.f32.gmra.mrb[0].mxu0 %v167
    %v258 = vpop.f32.mrb[0].mxu0
    %v259 = vadd.f32 0.0, %v258
    %v260 = vpop.f32.mrb[0].mxu0
    %261 = vmatprep.mubr.f32.mxu0 0.0
    %262 = vmatmul.mubr.f32.gmra.mrb[0].mxu0 %v170
    %v263 = vpop.f32.mrb[0].mxu0
    %v264 = vadd.f32 0.0, %v263
    %v265 = vpop.f32.mrb[0].mxu0
    %266 = vmatprep.mubr.f32.mxu0 0.0
    %267 = vmatmul.mubr.f32.gmra.mrb[0].mxu0 %v173
    %v268 = vpop.f32.mrb[0].mxu0
    %v269 = vadd.f32 0.0, %v268
    %v270 = vpop.f32.mrb[0].mxu0
    %271 = vmatprep.mubr.f32.mxu0 0.0
    %272 = vmatmul.mubr.f32.gmra.mrb[0].mxu0 %v176
    %v273 = vpop.f32.mrb[0].mxu0
    %v274 = vadd.f32 0.0, %v273
    %v275 = vpop.f32.mrb[0].mxu0
    %276 = vmatprep.mubr.f32.mxu0 0.0
    %277 = vmatmul.mubr.f32.gmra.mrb[0].mxu0 %v179
    %v278 = vpop.f32.mrb[0].mxu0
    %v279 = vadd.f32 0.0, %v278
    %v280 = vpop.f32.mrb[0].mxu0
    %281 = vmatprep.mubr.f32.mxu0 0.0
    %282 = vmatmul.mubr.f32.gmra.mrb[0].mxu0 %v182
    %v283 = vpop.f32.mrb[0].mxu0
    %v284 = vadd.f32 0.0, %v283
    %v285 = vpop.f32.mrb[0].mxu0
    %286 = vmatprep.mubr.f32.mxu0 0.0
    %287 = vmatmul.mubr.f32.gmra.mrb[0].mxu0 %v185
    %v288 = vpop.f32.mrb[0].mxu0
    %v289 = vadd.f32 0.0, %v288
    %v290 = vpop.f32.mrb[0].mxu0
    %291 = vdwg.mxu0
    %v292 = vsel %vm93, %v254, 0.0
    %v293 = vrot.slane %v292, 4
    %v294 = vadd.f32 %v292, %v293
    %v295 = vrot.slane %v294, 2
    %v296 = vadd.f32 %v294, %v295
    %v297 = vrot.slane %v296, 1
    %v298 = vadd.f32 %v296, %v297
    %v299 = vsel %vm93, %v259, 0.0
    %v300 = vrot.slane %v299, 4
    %v301 = vadd.f32 %v299, %v300
    %v302 = vrot.slane %v301, 2
    %v303 = vadd.f32 %v301, %v302
    %v304 = vrot.slane %v303, 1
    %v305 = vadd.f32 %v303, %v304
    %v306 = vsel %vm93, %v264, 0.0
    %v307 = vrot.slane %v306, 4
    %v308 = vadd.f32 %v306, %v307
    %v309 = vrot.slane %v308, 2
    %v310 = vadd.f32 %v308, %v309
    %v311 = vrot.slane %v310, 1
    %v312 = vadd.f32 %v310, %v311
    %v313 = vsel %vm93, %v269, 0.0
    %v314 = vrot.slane %v313, 4
    %v315 = vadd.f32 %v313, %v314
    %v316 = vrot.slane %v315, 2
    %v317 = vadd.f32 %v315, %v316
    %v318 = vrot.slane %v317, 1
    %v319 = vadd.f32 %v317, %v318
    %v320 = vsel %vm93, %v274, 0.0
    %v321 = vrot.slane %v320, 4
    %v322 = vadd.f32 %v320, %v321
    %v323 = vrot.slane %v322, 2
    %v324 = vadd.f32 %v322, %v323
    %v325 = vrot.slane %v324, 1
    %v326 = vadd.f32 %v324, %v325
    %v327 = vsel %vm93, %v279, 0.0
    %v328 = vrot.slane %v327, 4
    %v329 = vadd.f32 %v327, %v328
    %v330 = vrot.slane %v329, 2
    %v331 = vadd.f32 %v329, %v330
    %v332 = vrot.slane %v331, 1
    %v333 = vadd.f32 %v331, %v332
    %v334 = vsel %vm93, %v284, 0.0
    %v335 = vrot.slane %v334, 4
    %v336 = vadd.f32 %v334, %v335
    %v337 = vrot.slane %v336, 2
    %v338 = vadd.f32 %v336, %v337
    %v339 = vrot.slane %v338, 1
    %v340 = vadd.f32 %v338, %v339
    %v341 = vsel %vm93, %v289, 0.0
    %v342 = vrot.slane %v341, 4
    %v343 = vadd.f32 %v341, %v342
    %v344 = vrot.slane %v343, 2
    %v345 = vadd.f32 %v343, %v344
    %v346 = vrot.slane %v345, 1
    %v347 = vadd.f32 %v345, %v346
    %v348 = vmul.f32 %v298, %v150
    %v349 = vmul.f32 %v305, %v150
    %v350 = vmul.f32 %v312, %v150
    %v351 = vmul.f32 %v319, %v150
    %v352 = vmul.f32 %v326, %v150
    %v353 = vmul.f32 %v333, %v150
    %v354 = vmul.f32 %v340, %v150
    %v355 = vmul.f32 %v347, %v150
    %v356 = vld [vmem:[%s4] sm:$0x1]
    %v358 = vlaneseq
    %v359 = vshrl.u32 %v358, 7
    %v360 = vsub.s32 0, %v359
    %v361 = vrot.slane %v356, %v360
    %v363 = vadd.f32 %v348, %v361
    %v364 = vadd.f32 %v349, %v361
    %v365 = vadd.f32 %v350, %v361
    %v366 = vadd.f32 %v351, %v361
    %v367 = vadd.f32 %v352, %v361
    %v368 = vadd.f32 %v353, %v361
    %v369 = vadd.f32 %v354, %v361
    %v370 = vadd.f32 %v355, %v361
    %v371 = vld [vmem:[%s5] sm:$0x1]
    %v373 = vlaneseq
    %v374 = vshrl.u32 %v373, 7
    %v375 = vsub.s32 0, %v374
    %v376 = vrot.slane %v371, %v375
    %377 = vrot.lane.b32.xlu0 %v376, 32
    %v378 = vpop.permute.xlu0 %377
    %v380 = vadd.f32 %v254, %v378
    %v381 = vadd.f32 %v259, %v378
    %v382 = vadd.f32 %v264, %v378
    %v383 = vadd.f32 %v269, %v378
    %v384 = vadd.f32 %v274, %v378
    %v385 = vadd.f32 %v279, %v378
    %v386 = vadd.f32 %v284, %v378
    %v387 = vadd.f32 %v289, %v378
    %v388 = vld [vmem:[%s6] sm:$0x1]
    %v390 = vlaneseq
    %v391 = vshrl.u32 %v390, 7
    %v392 = vsub.s32 0, %v391
    %v393 = vrot.slane %v388, %v392
    %394 = vrot.lane.b32.xlu0 %v393, 64
    %v395 = vpop.permute.xlu0 %394
    %v397 = vadd.f32 %v254, %v395
    %v398 = vadd.f32 %v259, %v395
    %v399 = vadd.f32 %v264, %v395
    %v400 = vadd.f32 %v269, %v395
    %v401 = vadd.f32 %v274, %v395
    %v402 = vadd.f32 %v279, %v395
    %v403 = vadd.f32 %v284, %v395
    %v404 = vadd.f32 %v289, %v395
    %v405 = vmul.f32 %v363, 0.35355338
    %v406 = vmul.f32 %v364, 0.35355338
    %v407 = vmul.f32 %v365, 0.35355338
    %v408 = vmul.f32 %v366, 0.35355338
    %v409 = vmul.f32 %v367, 0.35355338
    %v410 = vmul.f32 %v368, 0.35355338
    %v411 = vmul.f32 %v369, 0.35355338
    %v412 = vmul.f32 %v370, 0.35355338
    %v413 = vlaneseq
    %v414 = vshrl.u32 %v413, 7
    %v415 = vsub.s32 0, %v414
    %v416 = vrot.slane %v405, %v415
    %v417 = vlaneseq
    %v418 = vshrl.u32 %v417, 7
    %v419 = vsub.s32 0, %v418
    %v420 = vrot.slane %v406, %v419
    %v421 = vlaneseq
    %v422 = vshrl.u32 %v421, 7
    %v423 = vsub.s32 0, %v422
    %v424 = vrot.slane %v407, %v423
    %v425 = vlaneseq
    %v426 = vshrl.u32 %v425, 7
    %v427 = vsub.s32 0, %v426
    %v428 = vrot.slane %v408, %v427
    %v429 = vlaneseq
    %v430 = vshrl.u32 %v429, 7
    %v431 = vsub.s32 0, %v430
    %v432 = vrot.slane %v409, %v431
    %v433 = vlaneseq
    %v434 = vshrl.u32 %v433, 7
    %v435 = vsub.s32 0, %v434
    %v436 = vrot.slane %v410, %v435
    %v437 = vlaneseq
    %v438 = vshrl.u32 %v437, 7
    %v439 = vsub.s32 0, %v438
    %v440 = vrot.slane %v411, %v439
    %v441 = vlaneseq
    %v442 = vshrl.u32 %v441, 7
    %v443 = vsub.s32 0, %v442
    %v444 = vrot.slane %v412, %v443
    %453 = vrot.lane.b32.xlu0 %v380, 96
    %v454 = vpop.permute.xlu0 %453
    %455 = vrot.lane.b32.xlu0 %v381, 96
    %v456 = vpop.permute.xlu0 %455
    %457 = vrot.lane.b32.xlu0 %v382, 96
    %v458 = vpop.permute.xlu0 %457
    %459 = vrot.lane.b32.xlu0 %v383, 96
    %v460 = vpop.permute.xlu0 %459
    %461 = vrot.lane.b32.xlu0 %v384, 96
    %v462 = vpop.permute.xlu0 %461
    %463 = vrot.lane.b32.xlu0 %v385, 96
    %v464 = vpop.permute.xlu0 %463
    %465 = vrot.lane.b32.xlu0 %v386, 96
    %v466 = vpop.permute.xlu0 %465
    %467 = vrot.lane.b32.xlu0 %v387, 96
    %v468 = vpop.permute.xlu0 %467
    %v477 = vmul.f32 %v416, %v454
    %v478 = vmul.f32 %v420, %v456
    %v479 = vmul.f32 %v424, %v458
    %v480 = vmul.f32 %v428, %v460
    %v481 = vmul.f32 %v432, %v462
    %v482 = vmul.f32 %v436, %v464
    %v483 = vmul.f32 %v440, %v466
    %v484 = vmul.f32 %v444, %v468
    %v485 = vld [vmem:[#allocation7] sm:$0xff]
    %v486 = vld [vmem:[#allocation7 + $0x8] sm:$0xff]
    %v487 = vld [vmem:[#allocation7 + $0x10] sm:$0xff]
    %v488 = vld [vmem:[#allocation7 + $0x18] sm:$0xff]
    %v490 = vsel %vm93, %v477, 0
    %v493 = vsel %vm93, %v478, 0
    %v496 = vsel %vm93, %v479, 0
    %v499 = vsel %vm93, %v480, 0
    %v502 = vsel %vm93, %v481, 0
    %v505 = vsel %vm93, %v482, 0
    %v508 = vsel %vm93, %v483, 0
    %v511 = vsel %vm93, %v484, 0
    %513 = vmatprep.subr.mxu0 0.0
    %514 = vmatpush1.msra.mxu0 %v485
    %515 = vmatprep.subr.mxu0 0.0
    %516 = vmatpush1.msra.mxu0 %v486
    %517 = vmatprep.subr.mxu0 0.0
    %518 = vmatpush1.msra.mxu0 %v487
    %519 = vmatprep.subr.mxu0 0.0
    %520 = vmatpush1.msra.mxu0 %v488
    %521 = vmatprep.subr.mxu0 0.0
    %522 = vmatpush1.msra.mxu0 0.0
    %523 = vmatprep.subr.mxu0 0.0
    %524 = vmatpush1.msra.mxu0 0.0
    %525 = vmatprep.subr.mxu0 0.0
    %526 = vmatpush1.msra.mxu0 0.0
    %527 = vmatprep.subr.mxu0 0.0
    %528 = vmatpush1.msra.mxu0 0.0
    %529 = vmatprep.subr.mxu0 0.0
    %530 = vmatpush1.msra.mxu0 0.0
    %531 = vmatprep.subr.mxu0 0.0
    %532 = vmatpush1.msra.mxu0 0.0
    %533 = vmatprep.subr.mxu0 0.0
    %534 = vmatpush1.msra.mxu0 0.0
    %535 = vmatprep.subr.mxu0 0.0
    %536 = vmatpush1.msra.mxu0 0.0
    %537 = vmatprep.subr.mxu0 0.0
    %538 = vmatpush1.msra.mxu0 0.0
    %539 = vmatprep.subr.mxu0 0.0
    %540 = vmatpush1.msra.mxu0 0.0
    %541 = vmatprep.subr.mxu0 0.0
    %542 = vmatpush1.msra.mxu0 0.0
    %543 = vmatprep.subr.mxu0 0.0
    %544 = vmatpush1.msra.mxu0 0.0
    %545 = vmatprep.subr.mxu0 0.0
    %546 = vmatpush1.msra.mxu0 0.0
    %547 = vmatprep.subr.mxu0 0.0
    %548 = vmatpush1.msra.mxu0 0.0
    %549 = vmatprep.subr.mxu0 0.0
    %550 = vmatpush1.msra.mxu0 0.0
    %551 = vmatprep.subr.mxu0 0.0
    %552 = vmatpush1.msra.mxu0 0.0
    %553 = vmatprep.subr.mxu0 0.0
    %554 = vmatpush1.msra.mxu0 0.0
    %555 = vmatprep.subr.mxu0 0.0
    %556 = vmatpush1.msra.mxu0 0.0
    %557 = vmatprep.subr.mxu0 0.0
    %558 = vmatpush1.msra.mxu0 0.0
    %559 = vmatprep.subr.mxu0 0.0
    %560 = vmatpush1.msra.mxu0 0.0
    %561 = vmatprep.subr.mxu0 0.0
    %562 = vmatpush1.msra.mxu0 0.0
    %563 = vmatprep.subr.mxu0 0.0
    %564 = vmatpush1.msra.mxu0 0.0
    %565 = vmatprep.subr.mxu0 0.0
    %566 = vmatpush1.msra.mxu0 0.0
    %567 = vmatprep.subr.mxu0 0.0
    %568 = vmatpush1.msra.mxu0 0.0
    %569 = vmatprep.subr.mxu0 0.0
    %570 = vmatpush1.msra.mxu0 0.0
    %571 = vmatprep.subr.mxu0 0.0
    %572 = vmatpush1.msra.mxu0 0.0
    %573 = vmatprep.subr.mxu0 0.0
    %574 = vmatpush1.msra.mxu0 0.0
    %575 = vmatprep.subr.mxu0 0.0
    %576 = vmatpush1.msra.mxu0 0.0
    %577 = vmatprep.mubr.f32.mxu0 0.0
    %578 = vmatmul.mubr.f32.gmra.mrb[0].mxu0 %v490
    %v579 = vpop.f32.mrb[0].mxu0
    %v580 = vadd.f32 0.0, %v579
    %v581 = vpop.f32.mrb[0].mxu0
    %582 = vmatprep.mubr.f32.mxu0 0.0
    %583 = vmatmul.mubr.f32.gmra.mrb[0].mxu0 %v493
    %v584 = vpop.f32.mrb[0].mxu0
    %v585 = vadd.f32 0.0, %v584
    %v586 = vpop.f32.mrb[0].mxu0
    %587 = vmatprep.mubr.f32.mxu0 0.0
    %588 = vmatmul.mubr.f32.gmra.mrb[0].mxu0 %v496
    %v589 = vpop.f32.mrb[0].mxu0
    %v590 = vadd.f32 0.0, %v589
    %v591 = vpop.f32.mrb[0].mxu0
    %592 = vmatprep.mubr.f32.mxu0 0.0
    %593 = vmatmul.mubr.f32.gmra.mrb[0].mxu0 %v499
    %v594 = vpop.f32.mrb[0].mxu0
    %v595 = vadd.f32 0.0, %v594
    %v596 = vpop.f32.mrb[0].mxu0
    %597 = vmatprep.mubr.f32.mxu0 0.0
    %598 = vmatmul.mubr.f32.gmra.mrb[0].mxu0 %v502
    %v599 = vpop.f32.mrb[0].mxu0
    %v600 = vadd.f32 0.0, %v599
    %v601 = vpop.f32.mrb[0].mxu0
    %602 = vmatprep.mubr.f32.mxu0 0.0
    %603 = vmatmul.mubr.f32.gmra.mrb[0].mxu0 %v505
    %v604 = vpop.f32.mrb[0].mxu0
    %v605 = vadd.f32 0.0, %v604
    %v606 = vpop.f32.mrb[0].mxu0
    %607 = vmatprep.mubr.f32.mxu0 0.0
    %608 = vmatmul.mubr.f32.gmra.mrb[0].mxu0 %v508
    %v609 = vpop.f32.mrb[0].mxu0
    %v610 = vadd.f32 0.0, %v609
    %v611 = vpop.f32.mrb[0].mxu0
    %612 = vmatprep.mubr.f32.mxu0 0.0
    %613 = vmatmul.mubr.f32.gmra.mrb[0].mxu0 %v511
    %v614 = vpop.f32.mrb[0].mxu0
    %v615 = vadd.f32 0.0, %v614
    %v616 = vpop.f32.mrb[0].mxu0
    %617 = vdwg.mxu0
    %v618 = vsel %vm93, %v580, -inf
    %v619 = vrot.slane %v618, 4
    %v620 = vmax.f32 %v618, %v619
    %v621 = vrot.slane %v620, 2
    %v622 = vmax.f32 %v620, %v621
    %v623 = vrot.slane %v622, 1
    %v624 = vmax.f32 %v622, %v623
    %v625 = vsel %vm93, %v585, -inf
    %v626 = vrot.slane %v625, 4
    %v627 = vmax.f32 %v625, %v626
    %v628 = vrot.slane %v627, 2
    %v629 = vmax.f32 %v627, %v628
    %v630 = vrot.slane %v629, 1
    %v631 = vmax.f32 %v629, %v630
    %v632 = vsel %vm93, %v590, -inf
    %v633 = vrot.slane %v632, 4
    %v634 = vmax.f32 %v632, %v633
    %v635 = vrot.slane %v634, 2
    %v636 = vmax.f32 %v634, %v635
    %v637 = vrot.slane %v636, 1
    %v638 = vmax.f32 %v636, %v637
    %v639 = vsel %vm93, %v595, -inf
    %v640 = vrot.slane %v639, 4
    %v641 = vmax.f32 %v639, %v640
    %v642 = vrot.slane %v641, 2
    %v643 = vmax.f32 %v641, %v642
    %v644 = vrot.slane %v643, 1
    %v645 = vmax.f32 %v643, %v644
    %v646 = vsel %vm93, %v600, -inf
    %v647 = vrot.slane %v646, 4
    %v648 = vmax.f32 %v646, %v647
    %v649 = vrot.slane %v648, 2
    %v650 = vmax.f32 %v648, %v649
    %v651 = vrot.slane %v650, 1
    %v652 = vmax.f32 %v650, %v651
    %v653 = vsel %vm93, %v605, -inf
    %v654 = vrot.slane %v653, 4
    %v655 = vmax.f32 %v653, %v654
    %v656 = vrot.slane %v655, 2
    %v657 = vmax.f32 %v655, %v656
    %v658 = vrot.slane %v657, 1
    %v659 = vmax.f32 %v657, %v658
    %v660 = vsel %vm93, %v610, -inf
    %v661 = vrot.slane %v660, 4
    %v662 = vmax.f32 %v660, %v661
    %v663 = vrot.slane %v662, 2
    %v664 = vmax.f32 %v662, %v663
    %v665 = vrot.slane %v664, 1
    %v666 = vmax.f32 %v664, %v665
    %v667 = vsel %vm93, %v615, -inf
    %v668 = vrot.slane %v667, 4
    %v669 = vmax.f32 %v667, %v668
    %v670 = vrot.slane %v669, 2
    %v671 = vmax.f32 %v669, %v670
    %v672 = vrot.slane %v671, 1
    %v673 = vmax.f32 %v671, %v672
    %v674 = vsub.f32 %v580, %v624
    %v675 = vsub.f32 %v585, %v631
    %v676 = vsub.f32 %v590, %v638
    %v677 = vsub.f32 %v595, %v645
    %v678 = vsub.f32 %v600, %v652
    %v679 = vsub.f32 %v605, %v659
    %v680 = vsub.f32 %v610, %v666
    %v681 = vsub.f32 %v615, %v673
    %v682 = vmul.f32 %v674, 1.442695
    %v683 = vpow.pop %v682
    %v684 = vmul.f32 %v675, 1.442695
    %v685 = vpow.pop %v684
    %v686 = vmul.f32 %v676, 1.442695
    %v687 = vpow.pop %v686
    %v688 = vmul.f32 %v677, 1.442695
    %v689 = vpow.pop %v688
    %v690 = vmul.f32 %v678, 1.442695
    %v691 = vpow.pop %v690
    %v692 = vmul.f32 %v679, 1.442695
    %v693 = vpow.pop %v692
    %v694 = vmul.f32 %v680, 1.442695
    %v695 = vpow.pop %v694
    %v696 = vmul.f32 %v681, 1.442695
    %v697 = vpow.pop %v696
    %v698 = vsel %vm93, %v683, 0.0
    %v699 = vrot.slane %v698, 4
    %v700 = vadd.f32 %v698, %v699
    %v701 = vrot.slane %v700, 2
    %v702 = vadd.f32 %v700, %v701
    %v703 = vrot.slane %v702, 1
    %v704 = vadd.f32 %v702, %v703
    %v705 = vsel %vm93, %v685, 0.0
    %v706 = vrot.slane %v705, 4
    %v707 = vadd.f32 %v705, %v706
    %v708 = vrot.slane %v707, 2
    %v709 = vadd.f32 %v707, %v708
    %v710 = vrot.slane %v709, 1
    %v711 = vadd.f32 %v709, %v710
    %v712 = vsel %vm93, %v687, 0.0
    %v713 = vrot.slane %v712, 4
    %v714 = vadd.f32 %v712, %v713
    %v715 = vrot.slane %v714, 2
    %v716 = vadd.f32 %v714, %v715
    %v717 = vrot.slane %v716, 1
    %v718 = vadd.f32 %v716, %v717
    %v719 = vsel %vm93, %v689, 0.0
    %v720 = vrot.slane %v719, 4
    %v721 = vadd.f32 %v719, %v720
    %v722 = vrot.slane %v721, 2
    %v723 = vadd.f32 %v721, %v722
    %v724 = vrot.slane %v723, 1
    %v725 = vadd.f32 %v723, %v724
    %v726 = vsel %vm93, %v691, 0.0
    %v727 = vrot.slane %v726, 4
    %v728 = vadd.f32 %v726, %v727
    %v729 = vrot.slane %v728, 2
    %v730 = vadd.f32 %v728, %v729
    %v731 = vrot.slane %v730, 1
    %v732 = vadd.f32 %v730, %v731
    %v733 = vsel %vm93, %v693, 0.0
    %v734 = vrot.slane %v733, 4
    %v735 = vadd.f32 %v733, %v734
    %v736 = vrot.slane %v735, 2
    %v737 = vadd.f32 %v735, %v736
    %v738 = vrot.slane %v737, 1
    %v739 = vadd.f32 %v737, %v738
    %v740 = vsel %vm93, %v695, 0.0
    %v741 = vrot.slane %v740, 4
    %v742 = vadd.f32 %v740, %v741
    %v743 = vrot.slane %v742, 2
    %v744 = vadd.f32 %v742, %v743
    %v745 = vrot.slane %v744, 1
    %v746 = vadd.f32 %v744, %v745
    %v747 = vsel %vm93, %v697, 0.0
    %v748 = vrot.slane %v747, 4
    %v749 = vadd.f32 %v747, %v748
    %v750 = vrot.slane %v749, 2
    %v751 = vadd.f32 %v749, %v750
    %v752 = vrot.slane %v751, 1
    %v753 = vadd.f32 %v751, %v752
    %v754 = vrcp.pop %v704
    %v755 = vrcp.pop %v711
    %v756 = vrcp.pop %v718
    %v757 = vrcp.pop %v725
    %v758 = vrcp.pop %v732
    %v759 = vrcp.pop %v739
    %v760 = vrcp.pop %v746
    %v761 = vrcp.pop %v753
    %v762 = vmul.f32 %v683, %v754
    %v763 = vmul.f32 %v685, %v755
    %v764 = vmul.f32 %v687, %v756
    %v765 = vmul.f32 %v689, %v757
    %v766 = vmul.f32 %v691, %v758
    %v767 = vmul.f32 %v693, %v759
    %v768 = vmul.f32 %v695, %v760
    %v769 = vmul.f32 %v697, %v761
    %778 = vrot.lane.b32.xlu0 %v397, 64
    %v779 = vpop.permute.xlu0 %778
    %780 = vrot.lane.b32.xlu0 %v398, 64
    %v781 = vpop.permute.xlu0 %780
    %782 = vrot.lane.b32.xlu0 %v399, 64
    %v783 = vpop.permute.xlu0 %782
    %784 = vrot.lane.b32.xlu0 %v400, 64
    %v785 = vpop.permute.xlu0 %784
    %786 = vrot.lane.b32.xlu0 %v401, 64
    %v787 = vpop.permute.xlu0 %786
    %788 = vrot.lane.b32.xlu0 %v402, 64
    %v789 = vpop.permute.xlu0 %788
    %790 = vrot.lane.b32.xlu0 %v403, 64
    %v791 = vpop.permute.xlu0 %790
    %792 = vrot.lane.b32.xlu0 %v404, 64
    %v793 = vpop.permute.xlu0 %792
    %v802 = vmul.f32 %v762, %v779
    %v803 = vmul.f32 %v763, %v781
    %v804 = vmul.f32 %v764, %v783
    %v805 = vmul.f32 %v765, %v785
    %v806 = vmul.f32 %v766, %v787
    %v807 = vmul.f32 %v767, %v789
    %v808 = vmul.f32 %v768, %v791
    %v809 = vmul.f32 %v769, %v793
    %v810 = vsel %vm93, %v802, 0.0
    %v811 = vrot.slane %v810, 4
    %v812 = vadd.f32 %v810, %v811
    %v813 = vrot.slane %v812, 2
    %v814 = vadd.f32 %v812, %v813
    %v815 = vrot.slane %v814, 1
    %v816 = vadd.f32 %v814, %v815
    %v817 = vsel %vm93, %v803, 0.0
    %v818 = vrot.slane %v817, 4
    %v819 = vadd.f32 %v817, %v818
    %v820 = vrot.slane %v819, 2
    %v821 = vadd.f32 %v819, %v820
    %v822 = vrot.slane %v821, 1
    %v823 = vadd.f32 %v821, %v822
    %v824 = vsel %vm93, %v804, 0.0
    %v825 = vrot.slane %v824, 4
    %v826 = vadd.f32 %v824, %v825
    %v827 = vrot.slane %v826, 2
    %v828 = vadd.f32 %v826, %v827
    %v829 = vrot.slane %v828, 1
    %v830 = vadd.f32 %v828, %v829
    %v831 = vsel %vm93, %v805, 0.0
    %v832 = vrot.slane %v831, 4
    %v833 = vadd.f32 %v831, %v832
    %v834 = vrot.slane %v833, 2
    %v835 = vadd.f32 %v833, %v834
    %v836 = vrot.slane %v835, 1
    %v837 = vadd.f32 %v835, %v836
    %v838 = vsel %vm93, %v806, 0.0
    %v839 = vrot.slane %v838, 4
    %v840 = vadd.f32 %v838, %v839
    %v841 = vrot.slane %v840, 2
    %v842 = vadd.f32 %v840, %v841
    %v843 = vrot.slane %v842, 1
    %v844 = vadd.f32 %v842, %v843
    %v845 = vsel %vm93, %v807, 0.0
    %v846 = vrot.slane %v845, 4
    %v847 = vadd.f32 %v845, %v846
    %v848 = vrot.slane %v847, 2
    %v849 = vadd.f32 %v847, %v848
    %v850 = vrot.slane %v849, 1
    %v851 = vadd.f32 %v849, %v850
    %v852 = vsel %vm93, %v808, 0.0
    %v853 = vrot.slane %v852, 4
    %v854 = vadd.f32 %v852, %v853
    %v855 = vrot.slane %v854, 2
    %v856 = vadd.f32 %v854, %v855
    %v857 = vrot.slane %v856, 1
    %v858 = vadd.f32 %v856, %v857
    %v859 = vsel %vm93, %v809, 0.0
    %v860 = vrot.slane %v859, 4
    %v861 = vadd.f32 %v859, %v860
    %v862 = vrot.slane %v861, 2
    %v863 = vadd.f32 %v861, %v862
    %v864 = vrot.slane %v863, 1
    %v865 = vadd.f32 %v863, %v864
    %v866 = vld [vmem:[#allocation8] sm:$0xff]
    %v867 = vld [vmem:[#allocation8 + $0x8] sm:$0xff]
    %v868 = vld [vmem:[#allocation8 + $0x10] sm:$0xff]
    %v869 = vld [vmem:[#allocation8 + $0x18] sm:$0xff]
    %v870 = vld [vmem:[%s7] sm:$0x1]
    %v872 = vlaneseq
    %v873 = vshrl.u32 %v872, 7
    %v874 = vsub.s32 0, %v873
    %v875 = vrot.slane %v870, %v874
    %vm885 = vcmask 1041409
    %v886 = vsel %vm885, %v823, %v816
    %vm887 = vcmask 1042434
    %v888 = vsel %vm887, %v830, %v886
    %vm889 = vcmask 1043459
    %v890 = vsel %vm889, %v837, %v888
    %vm891 = vcmask 1044484
    %v892 = vsel %vm891, %v844, %v890
    %vm893 = vcmask 1045509
    %v894 = vsel %vm893, %v851, %v892
    %vm895 = vcmask 1046534
    %v896 = vsel %vm895, %v858, %v894
    %vm897 = vcmask 1047559
    %v898 = vsel %vm897, %v865, %v896
    %v899 = vsel %vm93, %v898, 0
    %901 = vmatprep.subr.mxu0 0.0
    %902 = vmatpush1.msra.mxu0 %v866
    %903 = vmatprep.subr.mxu0 0.0
    %904 = vmatpush1.msra.mxu0 %v867
    %905 = vmatprep.subr.mxu0 0.0
    %906 = vmatpush1.msra.mxu0 %v868
    %907 = vmatprep.subr.mxu0 0.0
    %908 = vmatpush1.msra.mxu0 %v869
    %909 = vmatprep.subr.mxu0 0.0
    %910 = vmatpush1.msra.mxu0 0.0
    %911 = vmatprep.subr.mxu0 0.0
    %912 = vmatpush1.msra.mxu0 0.0
    %913 = vmatprep.subr.mxu0 0.0
    %914 = vmatpush1.msra.mxu0 0.0
    %915 = vmatprep.subr.mxu0 0.0
    %916 = vmatpush1.msra.mxu0 0.0
    %917 = vmatprep.subr.mxu0 0.0
    %918 = vmatpush1.msra.mxu0 0.0
    %919 = vmatprep.subr.mxu0 0.0
    %920 = vmatpush1.msra.mxu0 0.0
    %921 = vmatprep.subr.mxu0 0.0
    %922 = vmatpush1.msra.mxu0 0.0
    %923 = vmatprep.subr.mxu0 0.0
    %924 = vmatpush1.msra.mxu0 0.0
    %925 = vmatprep.subr.mxu0 0.0
    %926 = vmatpush1.msra.mxu0 0.0
    %927 = vmatprep.subr.mxu0 0.0
    %928 = vmatpush1.msra.mxu0 0.0
    %929 = vmatprep.subr.mxu0 0.0
    %930 = vmatpush1.msra.mxu0 0.0
    %931 = vmatprep.subr.mxu0 0.0
    %932 = vmatpush1.msra.mxu0 0.0
    %933 = vmatprep.subr.mxu0 0.0
    %934 = vmatpush1.msra.mxu0 0.0
    %935 = vmatprep.subr.mxu0 0.0
    %936 = vmatpush1.msra.mxu0 0.0
    %937 = vmatprep.subr.mxu0 0.0
    %938 = vmatpush1.msra.mxu0 0.0
    %939 = vmatprep.subr.mxu0 0.0
    %940 = vmatpush1.msra.mxu0 0.0
    %941 = vmatprep.subr.mxu0 0.0
    %942 = vmatpush1.msra.mxu0 0.0
    %943 = vmatprep.subr.mxu0 0.0
    %944 = vmatpush1.msra.mxu0 0.0
    %945 = vmatprep.subr.mxu0 0.0
    %946 = vmatpush1.msra.mxu0 0.0
    %947 = vmatprep.subr.mxu0 0.0
    %948 = vmatpush1.msra.mxu0 0.0
    %949 = vmatprep.subr.mxu0 0.0
    %950 = vmatpush1.msra.mxu0 0.0
    %951 = vmatprep.subr.mxu0 0.0
    %952 = vmatpush1.msra.mxu0 0.0
    %953 = vmatprep.subr.mxu0 0.0
    %954 = vmatpush1.msra.mxu0 0.0
    %955 = vmatprep.subr.mxu0 0.0
    %956 = vmatpush1.msra.mxu0 0.0
    %957 = vmatprep.subr.mxu0 0.0
    %958 = vmatpush1.msra.mxu0 0.0
    %959 = vmatprep.subr.mxu0 0.0
    %960 = vmatpush1.msra.mxu0 0.0
    %961 = vmatprep.subr.mxu0 0.0
    %962 = vmatpush1.msra.mxu0 0.0
    %963 = vmatprep.subr.mxu0 0.0
    %964 = vmatpush1.msra.mxu0 0.0
    %965 = vmatprep.mubr.f32.mxu0 0.0
    %966 = vmatmul.mubr.f32.gmra.mrb[0].mxu0 %v899
    %v967 = vpop.f32.mrb[0].mxu0
    %v968 = vadd.f32 %v875, %v967
    %v969 = vpop.f32.mrb[0].mxu0
    %970 = vdwg.mxu0
    %v979 = vsel %vm885, %v152, %v151
    %v980 = vsel %vm887, %v153, %v979
    %v981 = vsel %vm889, %v154, %v980
    %v982 = vsel %vm891, %v155, %v981
    %v983 = vsel %vm893, %v156, %v982
    %v984 = vsel %vm895, %v157, %v983
    %v985 = vsel %vm897, %v158, %v984
    %v987 = vadd.f32 %v968, %v985
    %988 = vst.msk [vmem:[#allocation10] sm:$0xff] %vm93, %v987
    // Predicated region
    $region50: #{tpu_custom_call.1} parent=1 // pred_check
      _
    $region51: #{tpu_custom_call.1} parent=1 // pred_check_branch
      %990 = sbr.rel (0) target = $region53
    $region52: #{tpu_custom_call.1} parent=1 // pred_region
      %s992 = ssub.s32 128, 128
      %993 = vsyncadd [#allocation4], %s992
      %s995 = sshll.u32 [#allocation10], 4
      %s996 = int_to_ptr.vmem [resolvable:$true] %s995
      %998 = dma.vmem_to_hbm [thread:$0]  %s996, 128, %s8, [#allocation4]
    $region53: #{tpu_custom_call.1} parent=1 // pred_fallthru
      _
    // Predicated region
    $region54: #{tpu_custom_call.1} parent=1 // pred_check
      _
    $region55: #{tpu_custom_call.1} parent=1 // pred_check_branch
      %1000 = sbr.rel (0) target = $region57
    $region56: #{tpu_custom_call.1} parent=1 // pred_region
      %1001 = dma.done [#allocation4], 128
    $region57: #{tpu_custom_call.1} parent=1 // pred_fallthru
      _
    %1002 = vsyncpa [#allocation3], 1
    %1003 = vsyncpa [#allocation6], 1
    %1004 = vsyncpa [#allocation9], 1
    %1005 = vsyncpa [#allocation4], 1

</llo_original>
